<compile_context>
chip_gen: v7x
topology: tpu7x:2x2x1
jax: 0.10.0
libtpu: 0.0.40
codegen_flags: <defaults>
</compile_context>

<pallas_src>
import math
import jax
import jax.numpy as jnp
from jax import lax
from jax.experimental import pallas as pl
from jax.experimental.pallas import tpu as pltpu  # noqa: F401 (imported per convention)

# ---- small, module-consistent shapes -------------------------------------
S = 8          # sequence length
N = 2          # batch (power of two -> batch id = row & (N-1))
E = 32         # d_model
H = 4          # nhead
DH = E // H    # head dim = 8
FF = 64        # dim_feedforward
EPS = 1e-5     # layer_norm_eps
R = S * N      # rows handled per kernel invocation (16, power of two)
HR = H * R     # head-stacked rows (64)
LOG2_R = R.bit_length() - 1

assert N & (N - 1) == 0 and R & (R - 1) == 0 and R % N == 0


def _layernorm(x, gamma, beta):
    mu = jnp.mean(x, axis=-1, keepdims=True)
    var = jnp.mean((x - mu) ** 2, axis=-1, keepdims=True)
    return (x - mu) * lax.rsqrt(var + EPS) * gamma + beta


def encoder_layer_kernel(x_ref, wqkv_ref, bqkv_ref, wo_ref,
                         w1_ref, b1_ref, w2_ref, vecs_ref, o_ref):
    x = x_ref[...]                                     # (R, E), rows = (s, n) flattened

    vecs = vecs_ref[...]                               # (6, E): bo, b2, g1, be1, g2, be2
    bo, b2 = vecs[0:1, :], vecs[1:2, :]
    g1, be1 = vecs[2:3, :], vecs[3:4, :]
    g2, be2 = vecs[4:5, :], vecs[5:6, :]

    # ---- fused QKV projection: one MXU push -> (R, 3E) ----
    # columns are head-major: [q_h | k_h | v_h] per head, and the softmax
    # scale 1/sqrt(DH) is already folded into the q columns (pack_params).
    qkv = jnp.dot(x, wqkv_ref[...], preferred_element_type=jnp.float32) + bqkv_ref[...]

    # stack heads along sublanes: (R, 3E) -> (H*R, 3*DH).
    qkv_s = jnp.concatenate(
        [qkv[:, h * 3 * DH:(h + 1) * 3 * DH] for h in range(H)], axis=0)
    q_s = qkv_s[:, 0:DH]                               # (HR, DH), scale pre-folded
    k_s = qkv_s[:, DH:2 * DH]
    v_s = qkv_s[:, 2 * DH:3 * DH]

    # Additive mask over the stacked rows: stacked row i = h*R + (s*N + n);
    # attention allowed only within the same head (i >> log2(R)) and the same
    # batch (i & (N-1)).  H, R, N are powers of two -> shifts/ANDs only.
    ri = lax.broadcasted_iota(jnp.int32, (HR, HR), 0)
    ci = lax.broadcasted_iota(jnp.int32, (HR, HR), 1)
    ok = ((ri >> LOG2_R) == (ci >> LOG2_R)) & ((ri & (N - 1)) == (ci & (N - 1)))
    bias = jnp.where(ok, 0.0, -1e30).astype(jnp.float32)

    # one score matmul for all heads/batches: (HR,DH) x (HR,DH)^T -> (HR,HR)
    s = lax.dot_general(q_s, k_s, (((1,), (1,)), ((), ())),
                        preferred_element_type=jnp.float32) + bias
    s = s - jnp.max(s, axis=-1, keepdims=True)         # stable softmax (1 launch)
    p = jnp.exp(s)
    p = p * pl.reciprocal(jnp.sum(p, axis=-1, keepdims=True), approx=True)

    # one context matmul for all heads: (HR,HR) @ (HR,DH) -> (HR,DH)
    ctx_s = jnp.dot(p, v_s, preferred_element_type=jnp.float32)

    # un-stack heads back to lanes (head h -> lane offset h*DH), then ONE
    # (R,E)@(E,E) output projection with the full wo.
    ctx = jnp.concatenate([ctx_s[h * R:(h + 1) * R, :] for h in range(H)], axis=1)
    attn = jnp.dot(ctx, wo_ref[...], preferred_element_type=jnp.float32) + bo

    # dropout1 == identity (eval)
    y = _layernorm(x + attn, g1, be1)

    # ---- feed-forward: linear1 -> relu -> (dropout) -> linear2 ----
    hid = jnp.dot(y, w1_ref[...], preferred_element_type=jnp.float32) + b1_ref[...]
    hid = jnp.maximum(hid, 0.0)
    ff = jnp.dot(hid, w2_ref[...], preferred_element_type=jnp.float32) + b2

    # dropout2 == identity (eval)
    o_ref[...] = _layernorm(y + ff, g2, be2)


def transformer_encoder_layer(src, packed):
    """src: (S, N, E) float32 — PyTorch batch_first=False convention."""
    s, n, e = src.shape
    x = src.reshape(s * n, e)                          # contiguous flatten, no transpose
    out = pl.pallas_call(
        encoder_layer_kernel,
        out_shape=jax.ShapeDtypeStruct((s * n, e), jnp.float32),
        # no grid: one step, all operands resident in VMEM (weights DMA'd once)
    )(x, *packed)
    return out.reshape(s, n, e)


def init_params(key):
    """Deterministic synthetic parameters (already transposed to (in, out))."""
    ks = jax.random.split(key, 8)
    nrm = lambda k, shp, sc: jax.random.normal(k, shp, jnp.float32) * sc
    wq = nrm(ks[0], (E, E), 0.1)
    wk = nrm(ks[1], (E, E), 0.1)
    wv = nrm(ks[2], (E, E), 0.1)
    bq = nrm(ks[3], (1, E), 0.05)
    bk = jnp.zeros((1, E), jnp.float32)
    bv = nrm(ks[4], (1, E), 0.05)
    wo = nrm(ks[5], (E, E), 0.1)
    bo = jnp.zeros((1, E), jnp.float32)
    w1 = nrm(ks[6], (E, FF), 0.1)
    b1 = jnp.full((1, FF), 0.01, jnp.float32)
    w2 = nrm(ks[7], (FF, E), 0.1)
    b2 = jnp.zeros((1, E), jnp.float32)
    g1 = jnp.ones((1, E), jnp.float32)
    be1 = jnp.zeros((1, E), jnp.float32)
    g2 = jnp.ones((1, E), jnp.float32)
    be2 = jnp.zeros((1, E), jnp.float32)
    return (wq, wk, wv, bq, bk, bv, wo, bo, w1, b1, w2, b2, g1, be1, g2, be2)


def pack_params(params):
    """One-time host-side repack (outside the hot path):
      * fold the softmax scale 1/sqrt(DH) into Wq / bq,
      * interleave QKV columns head-major ([q_h|k_h|v_h] per head) so the
        kernel's sublane restack needs one slice per head,
      * stack the small (1,E) vectors into one (6,E) block."""
    (wq, wk, wv, bq, bk, bv, wo, bo, w1, b1, w2, b2, g1, be1, g2, be2) = params
    scale = 1.0 / math.sqrt(DH)
    wq_s, bq_s = wq * scale, bq * scale
    w_cols, b_cols = [], []
    for h in range(H):
        sl = slice(h * DH, (h + 1) * DH)
        w_cols += [wq_s[:, sl], wk[:, sl], wv[:, sl]]
        b_cols += [bq_s[:, sl], bk[:, sl], bv[:, sl]]
    wqkv = jnp.concatenate(w_cols, axis=1)             # (E, 3E), head-major
    bqkv = jnp.concatenate(b_cols, axis=1)             # (1, 3E), head-major
    vecs = jnp.concatenate([bo, b2, g1, be1, g2, be2], axis=0)   # (6, E)
    return (wqkv, bqkv, wo, w1, b1, w2, vecs)


def reference(src, params):
    """Plain-JAX reference of the same forward pass (for validation)."""
    (wq, wk, wv, bq, bk, bv, wo, bo, w1, b1, w2, b2, g1, be1, g2, be2) = params
    x = jnp.transpose(src, (1, 0, 2))                  # (N, S, E)
    q = x @ wq + bq
    k = x @ wk + bk
    v = x @ wv + bv
    qh = q.reshape(N, S, H, DH).transpose(0, 2, 1, 3)
    kh = k.reshape(N, S, H, DH).transpose(0, 2, 1, 3)
    vh = v.reshape(N, S, H, DH).transpose(0, 2, 1, 3)
    s = jnp.einsum('nhsd,nhtd->nhst', qh, kh) / math.sqrt(DH)
    p = jax.nn.softmax(s, axis=-1)
    a = jnp.einsum('nhst,nhtd->nhsd', p, vh).transpose(0, 2, 1, 3).reshape(N, S, E)
    a = a @ wo + bo
    y = _layernorm(x + a, g1, be1)
    hid = jnp.maximum(y @ w1 + b1, 0.0)
    z = _layernorm(y + (hid @ w2 + b2), g2, be2)
    return jnp.transpose(z, (1, 0, 2))


if __name__ == "__main__":
    key = jax.random.PRNGKey(0)
    kx, kp = jax.random.split(key)
    src = jax.random.normal(kx, (S, N, E), jnp.float32)   # (seq, batch, d_model)
    params = init_params(kp)
    packed = pack_params(params)

    out = transformer_encoder_layer(src, packed)
    out = jax.block_until_ready(out)

    ref = reference(src, params)
    assert out.shape == (S, N, E)
    max_err = float(jnp.max(jnp.abs(out - ref)))
    # tolerance 1e-3 accounts for the EUP approximate reciprocal in softmax
    assert jnp.allclose(out, ref, atol=1e-3, rtol=1e-3), max_err
    print("KERNEL_OK")
</pallas_src>

<mosaic_0001>
module attributes {stable_mosaic.version = 11 : i64} {
  func.func @encoder_layer_kernel(%arg0: memref<16x32xf32, #tpu.memory_space<vmem>>, %arg1: memref<32x96xf32, #tpu.memory_space<vmem>>, %arg2: memref<1x96xf32, #tpu.memory_space<vmem>>, %arg3: memref<32x32xf32, #tpu.memory_space<vmem>>, %arg4: memref<32x64xf32, #tpu.memory_space<vmem>>, %arg5: memref<1x64xf32, #tpu.memory_space<vmem>>, %arg6: memref<64x32xf32, #tpu.memory_space<vmem>>, %arg7: memref<6x32xf32, #tpu.memory_space<vmem>>, %arg8: memref<16x32xf32, #tpu.memory_space<vmem>>) attributes {dimension_semantics = [], scalar_prefetch = 0 : i64, scratch_operands = 0 : i64, tpu.core_type = #tpu.core_type<tc>} {
    %c0 = arith.constant 0 : index
    %c0_0 = arith.constant 0 : index
    %0 = vector.load %arg0[%c0, %c0_0] : memref<16x32xf32, #tpu.memory_space<vmem>>, vector<16x32xf32>
    %c0_1 = arith.constant 0 : index
    %c0_2 = arith.constant 0 : index
    %1 = vector.load %arg7[%c0_1, %c0_2] : memref<6x32xf32, #tpu.memory_space<vmem>>, vector<6x32xf32>
    %2 = vector.extract_strided_slice %1 {offsets = [0, 0], sizes = [1, 32], strides = [1, 1]} : vector<6x32xf32> to vector<1x32xf32>
    %3 = vector.extract_strided_slice %1 {offsets = [1, 0], sizes = [1, 32], strides = [1, 1]} : vector<6x32xf32> to vector<1x32xf32>
    %4 = vector.extract_strided_slice %1 {offsets = [2, 0], sizes = [1, 32], strides = [1, 1]} : vector<6x32xf32> to vector<1x32xf32>
    %5 = vector.extract_strided_slice %1 {offsets = [3, 0], sizes = [1, 32], strides = [1, 1]} : vector<6x32xf32> to vector<1x32xf32>
    %6 = vector.extract_strided_slice %1 {offsets = [4, 0], sizes = [1, 32], strides = [1, 1]} : vector<6x32xf32> to vector<1x32xf32>
    %7 = vector.extract_strided_slice %1 {offsets = [5, 0], sizes = [1, 32], strides = [1, 1]} : vector<6x32xf32> to vector<1x32xf32>
    %c0_3 = arith.constant 0 : index
    %c0_4 = arith.constant 0 : index
    %8 = vector.load %arg1[%c0_3, %c0_4] : memref<32x96xf32, #tpu.memory_space<vmem>>, vector<32x96xf32>
    %cst = arith.constant dense<0.000000e+00> : vector<16x96xf32>
    %9 = tpu.matmul %0, %8, %cst {dimension_numbers = #tpu.dot_dimension_numbers<[1], [0], [0], [1], [0, 0, 1, 1], [], []>} : vector<16x32xf32>, vector<32x96xf32>, vector<16x96xf32> -> vector<16x96xf32>
    %c0_5 = arith.constant 0 : index
    %c0_6 = arith.constant 0 : index
    %10 = vector.load %arg2[%c0_5, %c0_6] : memref<1x96xf32, #tpu.memory_space<vmem>>, vector<1x96xf32>
    %11 = vector.broadcast %10 : vector<1x96xf32> to vector<16x96xf32>
    %12 = arith.addf %9, %11 : vector<16x96xf32>
    %13 = vector.extract_strided_slice %12 {offsets = [0, 0], sizes = [16, 24], strides = [1, 1]} : vector<16x96xf32> to vector<16x24xf32>
    %14 = vector.extract_strided_slice %12 {offsets = [0, 24], sizes = [16, 24], strides = [1, 1]} : vector<16x96xf32> to vector<16x24xf32>
    %15 = vector.extract_strided_slice %12 {offsets = [0, 48], sizes = [16, 24], strides = [1, 1]} : vector<16x96xf32> to vector<16x24xf32>
    %16 = vector.extract_strided_slice %12 {offsets = [0, 72], sizes = [16, 24], strides = [1, 1]} : vector<16x96xf32> to vector<16x24xf32>
    %17 = tpu.concatenate %13, %14, %15, %16 in 0 : vector<16x24xf32>, vector<16x24xf32>, vector<16x24xf32>, vector<16x24xf32> -> vector<64x24xf32>
    %18 = vector.extract_strided_slice %17 {offsets = [0, 0], sizes = [64, 8], strides = [1, 1]} : vector<64x24xf32> to vector<64x8xf32>
    %19 = vector.extract_strided_slice %17 {offsets = [0, 8], sizes = [64, 8], strides = [1, 1]} : vector<64x24xf32> to vector<64x8xf32>
    %20 = vector.extract_strided_slice %17 {offsets = [0, 16], sizes = [64, 8], strides = [1, 1]} : vector<64x24xf32> to vector<64x8xf32>
    %21 = tpu.iota {dimensions = array<i32: 0>} : vector<64x64xi32>
    %22 = tpu.iota {dimensions = array<i32: 1>} : vector<64x64xi32>
    %c4_i32 = arith.constant 4 : i32
    %23 = vector.broadcast %c4_i32 : i32 to vector<64x64xi32>
    %24 = arith.shrsi %21, %23 : vector<64x64xi32>
    %c4_i32_7 = arith.constant 4 : i32
    %25 = vector.broadcast %c4_i32_7 : i32 to vector<64x64xi32>
    %26 = arith.shrsi %22, %25 : vector<64x64xi32>
    %27 = arith.cmpi eq, %24, %26 : vector<64x64xi32>
    %c1_i32 = arith.constant 1 : i32
    %28 = vector.broadcast %c1_i32 : i32 to vector<64x64xi32>
    %29 = arith.andi %21, %28 : vector<64x64xi32>
    %c1_i32_8 = arith.constant 1 : i32
    %30 = vector.broadcast %c1_i32_8 : i32 to vector<64x64xi32>
    %31 = arith.andi %22, %30 : vector<64x64xi32>
    %32 = arith.cmpi eq, %29, %31 : vector<64x64xi32>
    %33 = arith.andi %27, %32 : vector<64x64xi1>
    %cst_9 = arith.constant 0.000000e+00 : f32
    %cst_10 = arith.constant -1.000000e+30 : f32
    %34 = vector.broadcast %cst_9 : f32 to vector<64x64xf32>
    %35 = vector.broadcast %cst_10 : f32 to vector<64x64xf32>
    %36 = arith.select %33, %34, %35 : vector<64x64xi1>, vector<64x64xf32>
    %cst_11 = arith.constant dense<0.000000e+00> : vector<64x64xf32>
    %37 = tpu.matmul %18, %19, %cst_11 {dimension_numbers = #tpu.dot_dimension_numbers<[1], [1], [0], [0], [0, 0, 1, 0], [], []>} : vector<64x8xf32>, vector<64x8xf32>, vector<64x64xf32> -> vector<64x64xf32>
    %38 = arith.addf %37, %36 : vector<64x64xf32>
    %cst_12 = arith.constant dense<0xFF800000> : vector<64xf32>
    %39 = vector.multi_reduction <maximumf>, %38, %cst_12 [1] : vector<64x64xf32> to vector<64xf32>
    %40 = vector.shape_cast %39 : vector<64xf32> to vector<64x1xf32>
    %41 = vector.broadcast %40 : vector<64x1xf32> to vector<64x64xf32>
    %42 = arith.subf %38, %41 : vector<64x64xf32>
    %43 = math.exp %42 : vector<64x64xf32>
    %cst_13 = arith.constant dense<0.000000e+00> : vector<64xf32>
    %44 = vector.multi_reduction <add>, %43, %cst_13 [1] : vector<64x64xf32> to vector<64xf32>
    %45 = vector.shape_cast %44 : vector<64xf32> to vector<64x1xf32>
    %46 = tpu.reciprocal %45 {approx = true} : vector<64x1xf32> -> vector<64x1xf32>
    %47 = vector.broadcast %46 : vector<64x1xf32> to vector<64x64xf32>
    %48 = arith.mulf %43, %47 : vector<64x64xf32>
    %cst_14 = arith.constant dense<0.000000e+00> : vector<64x8xf32>
    %49 = tpu.matmul %48, %20, %cst_14 {dimension_numbers = #tpu.dot_dimension_numbers<[1], [0], [0], [1], [0, 0, 1, 1], [], []>} : vector<64x64xf32>, vector<64x8xf32>, vector<64x8xf32> -> vector<64x8xf32>
    %50 = vector.extract_strided_slice %49 {offsets = [0, 0], sizes = [16, 8], strides = [1, 1]} : vector<64x8xf32> to vector<16x8xf32>
    %51 = vector.extract_strided_slice %49 {offsets = [16, 0], sizes = [16, 8], strides = [1, 1]} : vector<64x8xf32> to vector<16x8xf32>
    %52 = vector.extract_strided_slice %49 {offsets = [32, 0], sizes = [16, 8], strides = [1, 1]} : vector<64x8xf32> to vector<16x8xf32>
    %53 = vector.extract_strided_slice %49 {offsets = [48, 0], sizes = [16, 8], strides = [1, 1]} : vector<64x8xf32> to vector<16x8xf32>
    %54 = tpu.concatenate %50, %51, %52, %53 in 1 : vector<16x8xf32>, vector<16x8xf32>, vector<16x8xf32>, vector<16x8xf32> -> vector<16x32xf32>
    %c0_15 = arith.constant 0 : index
    %c0_16 = arith.constant 0 : index
    %55 = vector.load %arg3[%c0_15, %c0_16] : memref<32x32xf32, #tpu.memory_space<vmem>>, vector<32x32xf32>
    %cst_17 = arith.constant dense<0.000000e+00> : vector<16x32xf32>
    %56 = tpu.matmul %54, %55, %cst_17 {dimension_numbers = #tpu.dot_dimension_numbers<[1], [0], [0], [1], [0, 0, 1, 1], [], []>} : vector<16x32xf32>, vector<32x32xf32>, vector<16x32xf32> -> vector<16x32xf32>
    %57 = vector.broadcast %2 : vector<1x32xf32> to vector<16x32xf32>
    %58 = arith.addf %56, %57 : vector<16x32xf32>
    %59 = arith.addf %0, %58 : vector<16x32xf32>
    %cst_18 = arith.constant dense<0.000000e+00> : vector<16xf32>
    %60 = vector.multi_reduction <add>, %59, %cst_18 [1] : vector<16x32xf32> to vector<16xf32>
    %61 = vector.shape_cast %60 : vector<16xf32> to vector<16x1xf32>
    %cst_19 = arith.constant 3.200000e+01 : f32
    %62 = vector.broadcast %cst_19 : f32 to vector<16x1xf32>
    %63 = arith.divf %61, %62 : vector<16x1xf32>
    %64 = vector.broadcast %63 : vector<16x1xf32> to vector<16x32xf32>
    %65 = arith.subf %59, %64 : vector<16x32xf32>
    %66 = arith.mulf %65, %65 : vector<16x32xf32>
    %cst_20 = arith.constant dense<0.000000e+00> : vector<16xf32>
    %67 = vector.multi_reduction <add>, %66, %cst_20 [1] : vector<16x32xf32> to vector<16xf32>
    %68 = vector.shape_cast %67 : vector<16xf32> to vector<16x1xf32>
    %cst_21 = arith.constant 3.200000e+01 : f32
    %69 = vector.broadcast %cst_21 : f32 to vector<16x1xf32>
    %70 = arith.divf %68, %69 : vector<16x1xf32>
    %71 = vector.broadcast %63 : vector<16x1xf32> to vector<16x32xf32>
    %72 = arith.subf %59, %71 : vector<16x32xf32>
    %cst_22 = arith.constant 9.99999974E-6 : f32
    %73 = vector.broadcast %cst_22 : f32 to vector<16x1xf32>
    %74 = arith.addf %70, %73 : vector<16x1xf32>
    %75 = math.rsqrt %74 : vector<16x1xf32>
    %76 = vector.broadcast %75 : vector<16x1xf32> to vector<16x32xf32>
    %77 = arith.mulf %72, %76 : vector<16x32xf32>
    %78 = vector.broadcast %4 : vector<1x32xf32> to vector<16x32xf32>
    %79 = arith.mulf %77, %78 : vector<16x32xf32>
    %80 = vector.broadcast %5 : vector<1x32xf32> to vector<16x32xf32>
    %81 = arith.addf %79, %80 : vector<16x32xf32>
    %c0_23 = arith.constant 0 : index
    %c0_24 = arith.constant 0 : index
    %82 = vector.load %arg4[%c0_23, %c0_24] : memref<32x64xf32, #tpu.memory_space<vmem>>, vector<32x64xf32>
    %cst_25 = arith.constant dense<0.000000e+00> : vector<16x64xf32>
    %83 = tpu.matmul %81, %82, %cst_25 {dimension_numbers = #tpu.dot_dimension_numbers<[1], [0], [0], [1], [0, 0, 1, 1], [], []>} : vector<16x32xf32>, vector<32x64xf32>, vector<16x64xf32> -> vector<16x64xf32>
    %c0_26 = arith.constant 0 : index
    %c0_27 = arith.constant 0 : index
    %84 = vector.load %arg5[%c0_26, %c0_27] : memref<1x64xf32, #tpu.memory_space<vmem>>, vector<1x64xf32>
    %85 = vector.broadcast %84 : vector<1x64xf32> to vector<16x64xf32>
    %86 = arith.addf %83, %85 : vector<16x64xf32>
    %cst_28 = arith.constant 0.000000e+00 : f32
    %87 = vector.broadcast %cst_28 : f32 to vector<16x64xf32>
    %88 = arith.maximumf %86, %87 : vector<16x64xf32>
    %c0_29 = arith.constant 0 : index
    %c0_30 = arith.constant 0 : index
    %89 = vector.load %arg6[%c0_29, %c0_30] : memref<64x32xf32, #tpu.memory_space<vmem>>, vector<64x32xf32>
    %cst_31 = arith.constant dense<0.000000e+00> : vector<16x32xf32>
    %90 = tpu.matmul %88, %89, %cst_31 {dimension_numbers = #tpu.dot_dimension_numbers<[1], [0], [0], [1], [0, 0, 1, 1], [], []>} : vector<16x64xf32>, vector<64x32xf32>, vector<16x32xf32> -> vector<16x32xf32>
    %91 = vector.broadcast %3 : vector<1x32xf32> to vector<16x32xf32>
    %92 = arith.addf %90, %91 : vector<16x32xf32>
    %93 = arith.addf %81, %92 : vector<16x32xf32>
    %cst_32 = arith.constant dense<0.000000e+00> : vector<16xf32>
    %94 = vector.multi_reduction <add>, %93, %cst_32 [1] : vector<16x32xf32> to vector<16xf32>
    %95 = vector.shape_cast %94 : vector<16xf32> to vector<16x1xf32>
    %cst_33 = arith.constant 3.200000e+01 : f32
    %96 = vector.broadcast %cst_33 : f32 to vector<16x1xf32>
    %97 = arith.divf %95, %96 : vector<16x1xf32>
    %98 = vector.broadcast %97 : vector<16x1xf32> to vector<16x32xf32>
    %99 = arith.subf %93, %98 : vector<16x32xf32>
    %100 = arith.mulf %99, %99 : vector<16x32xf32>
    %cst_34 = arith.constant dense<0.000000e+00> : vector<16xf32>
    %101 = vector.multi_reduction <add>, %100, %cst_34 [1] : vector<16x32xf32> to vector<16xf32>
    %102 = vector.shape_cast %101 : vector<16xf32> to vector<16x1xf32>
    %cst_35 = arith.constant 3.200000e+01 : f32
    %103 = vector.broadcast %cst_35 : f32 to vector<16x1xf32>
    %104 = arith.divf %102, %103 : vector<16x1xf32>
    %105 = vector.broadcast %97 : vector<16x1xf32> to vector<16x32xf32>
    %106 = arith.subf %93, %105 : vector<16x32xf32>
    %cst_36 = arith.constant 9.99999974E-6 : f32
    %107 = vector.broadcast %cst_36 : f32 to vector<16x1xf32>
    %108 = arith.addf %104, %107 : vector<16x1xf32>
    %109 = math.rsqrt %108 : vector<16x1xf32>
    %110 = vector.broadcast %109 : vector<16x1xf32> to vector<16x32xf32>
    %111 = arith.mulf %106, %110 : vector<16x32xf32>
    %112 = vector.broadcast %6 : vector<1x32xf32> to vector<16x32xf32>
    %113 = arith.mulf %111, %112 : vector<16x32xf32>
    %114 = vector.broadcast %7 : vector<1x32xf32> to vector<16x32xf32>
    %115 = arith.addf %113, %114 : vector<16x32xf32>
    %c0_37 = arith.constant 0 : index
    %c0_38 = arith.constant 0 : index
    %116 = vector.load %arg8[%c0_37, %c0_38] : memref<16x32xf32, #tpu.memory_space<vmem>>, vector<16x32xf32>
    tpu.vector_store %arg8[%c0_37, %c0_38], %115 {strides = array<i32>} : memref<16x32xf32, #tpu.memory_space<vmem>>, vector<16x32xf32>,
    return
  }
}

</mosaic_0001>

<llo_original>
// kernel: tpu_custom_call.1
$region0: #{tpu_custom_call.1}
  #allocation0 [shape = 'u32[]', space=smem, size = 0x4, offset = 0x4, fixed_abs, tag = 'smem constant byte address 0x4 - core index']
  #allocation1 [shape = 'u32[144,128]{1,0:T(1,128)}', space=vmem, size = 0x12000, scoped, tag = 'internal scratch']
  %s0 = inlined_call_operand.hbm [shape: f32[16,32], index: 0, kind: input, shape index: {}]
  %s1 = inlined_call_operand.vmem [shape: f32[32,96], index: 1, kind: input, shape index: {}]
  %s2 = inlined_call_operand.vmem [shape: f32[1,96], index: 2, kind: input, shape index: {}]
  %s3 = inlined_call_operand.vmem [shape: f32[32,32], index: 3, kind: input, shape index: {}]
  %s4 = inlined_call_operand.vmem [shape: f32[32,64], index: 4, kind: input, shape index: {}]
  %s5 = inlined_call_operand.vmem [shape: f32[1,64], index: 5, kind: input, shape index: {}]
  %s6 = inlined_call_operand.vmem [shape: f32[64,32], index: 6, kind: input, shape index: {}]
  %s7 = inlined_call_operand.vmem [shape: f32[6,32], index: 7, kind: input, shape index: {}]
  %s8 = inlined_call_operand.hbm [shape: f32[16,32], index: 8, kind: output, shape index: {}]
  %s9 = sld [smem:[#allocation0]]
  $region46: #{tpu_custom_call.1} parent=0
    _
  %s11 = ssub.s32 1, %s9
  %s12 = scalar_select 0, %s11, %s9
  $region1: #{tpu_custom_call.1} parent=0
    #allocation2 [shape = 'u8[8192]{0}', space=vmem, size = 0x2000, scoped, tag = 'input window, operand 0, single buffered']
    #allocation3 [shape = 's32[1]{0}', space=sflag, size = 0x4, scoped, tag = 'scoped memory for tpu_custom_call.1']
    #allocation4 [shape = 's32[1]{0}', space=sflag, size = 0x4, scoped, tag = 'scoped memory for tpu_custom_call.1']
    #allocation5 [shape = 'u8[8192]{0}', space=vmem, size = 0x2000, scoped, tag = 'output window, operand 0, single buffered']
    %13 = vsyncpa [#allocation3], 0
    %14 = vsyncpa [#allocation4], 0
    // Predicated region
    $region2: #{tpu_custom_call.1} parent=1 // pred_check
      _
    $region3: #{tpu_custom_call.1} parent=1 // pred_check_branch
      %16 = sbr.rel (0) target = $region5
    $region4: #{tpu_custom_call.1} parent=1 // pred_region
      %s18 = ssub.s32 256, 256
      %19 = vsyncadd [#allocation3], %s18
      %s20 = sshll.u32 [#allocation2], 4
      %s21 = int_to_ptr.vmem [resolvable:$true] %s20
      %26 = dma.hbm_to_vmem [thread:$0]  %s0, 256, %s21, [#allocation3], 128, 128, 8
    $region5: #{tpu_custom_call.1} parent=1 // pred_fallthru
      _
    // Predicated region
    $region6: #{tpu_custom_call.1} parent=1 // pred_check
      _
    $region7: #{tpu_custom_call.1} parent=1 // pred_check_branch
      %28 = sbr.rel (0) target = $region9
    $region8: #{tpu_custom_call.1} parent=1 // pred_region
      _
    $region9: #{tpu_custom_call.1} parent=1 // pred_fallthru
      _
    // Predicated region
    $region10: #{tpu_custom_call.1} parent=1 // pred_check
      _
    $region11: #{tpu_custom_call.1} parent=1 // pred_check_branch
      %30 = sbr.rel (0) target = $region13
    $region12: #{tpu_custom_call.1} parent=1 // pred_region
      _
    $region13: #{tpu_custom_call.1} parent=1 // pred_fallthru
      _
    // Predicated region
    $region14: #{tpu_custom_call.1} parent=1 // pred_check
      _
    $region15: #{tpu_custom_call.1} parent=1 // pred_check_branch
      %32 = sbr.rel (0) target = $region17
    $region16: #{tpu_custom_call.1} parent=1 // pred_region
      _
    $region17: #{tpu_custom_call.1} parent=1 // pred_fallthru
      _
    // Predicated region
    $region18: #{tpu_custom_call.1} parent=1 // pred_check
      _
    $region19: #{tpu_custom_call.1} parent=1 // pred_check_branch
      %34 = sbr.rel (0) target = $region21
    $region20: #{tpu_custom_call.1} parent=1 // pred_region
      _
    $region21: #{tpu_custom_call.1} parent=1 // pred_fallthru
      _
    // Predicated region
    $region22: #{tpu_custom_call.1} parent=1 // pred_check
      _
    $region23: #{tpu_custom_call.1} parent=1 // pred_check_branch
      %36 = sbr.rel (0) target = $region25
    $region24: #{tpu_custom_call.1} parent=1 // pred_region
      _
    $region25: #{tpu_custom_call.1} parent=1 // pred_fallthru
      _
    // Predicated region
    $region26: #{tpu_custom_call.1} parent=1 // pred_check
      _
    $region27: #{tpu_custom_call.1} parent=1 // pred_check_branch
      %38 = sbr.rel (0) target = $region29
    $region28: #{tpu_custom_call.1} parent=1 // pred_region
      _
    $region29: #{tpu_custom_call.1} parent=1 // pred_fallthru
      _
    // Predicated region
    $region30: #{tpu_custom_call.1} parent=1 // pred_check
      _
    $region31: #{tpu_custom_call.1} parent=1 // pred_check_branch
      %40 = sbr.rel (0) target = $region33
    $region32: #{tpu_custom_call.1} parent=1 // pred_region
      _
    $region33: #{tpu_custom_call.1} parent=1 // pred_fallthru
      _
    // Predicated region
    $region34: #{tpu_custom_call.1} parent=1 // pred_check
      _
    $region35: #{tpu_custom_call.1} parent=1 // pred_check_branch
      %42 = sbr.rel (0) target = $region37
    $region36: #{tpu_custom_call.1} parent=1 // pred_region
      %43 = dma.done [#allocation3], 256
    $region37: #{tpu_custom_call.1} parent=1 // pred_fallthru
      _
    %v44 = vld [vmem:[#allocation2] sm:$0xff]
    %v45 = vld [vmem:[#allocation2 + $0x8] sm:$0xff]
    %v46 = vld [vmem:[%s7] sm:$0x3f]
    %v47 = vld [vmem:[%s1] sm:$0xff]
    %v48 = vld [vmem:[%s1 + $0x8] sm:$0xff]
    %v49 = vld [vmem:[%s1 + $0x10] sm:$0xff]
    %v50 = vld [vmem:[%s1 + $0x18] sm:$0xff]
    %v51 = vld [vmem:[%s2] sm:$0x1]
    %v53 = vlaneseq
    %v54 = vshrl.u32 %v53, 7
    %v55 = vsub.s32 0, %v54
    %v56 = vrot.slane %v51, %v55
    %vm58 = vcmask 261120
    %v60 = vsel %vm58, %v44, 0
    %v63 = vsel %vm58, %v45, 0
    %65 = vmatprep.subr.mxu0 0.0
    %66 = vmatpush1.msra.mxu0 %v47
    %67 = vmatprep.subr.mxu0 0.0
    %68 = vmatpush1.msra.mxu0 %v48
    %69 = vmatprep.subr.mxu0 0.0
    %70 = vmatpush1.msra.mxu0 %v49
    %71 = vmatprep.subr.mxu0 0.0
    %72 = vmatpush1.msra.mxu0 %v50
    %73 = vmatprep.subr.mxu0 0.0
    %74 = vmatpush1.msra.mxu0 0.0
    %75 = vmatprep.subr.mxu0 0.0
    %76 = vmatpush1.msra.mxu0 0.0
    %77 = vmatprep.subr.mxu0 0.0
    %78 = vmatpush1.msra.mxu0 0.0
    %79 = vmatprep.subr.mxu0 0.0
    %80 = vmatpush1.msra.mxu0 0.0
    %81 = vmatprep.subr.mxu0 0.0
    %82 = vmatpush1.msra.mxu0 0.0
    %83 = vmatprep.subr.mxu0 0.0
    %84 = vmatpush1.msra.mxu0 0.0
    %85 = vmatprep.subr.mxu0 0.0
    %86 = vmatpush1.msra.mxu0 0.0
    %87 = vmatprep.subr.mxu0 0.0
    %88 = vmatpush1.msra.mxu0 0.0
    %89 = vmatprep.subr.mxu0 0.0
    %90 = vmatpush1.msra.mxu0 0.0
    %91 = vmatprep.subr.mxu0 0.0
    %92 = vmatpush1.msra.mxu0 0.0
    %93 = vmatprep.subr.mxu0 0.0
    %94 = vmatpush1.msra.mxu0 0.0
    %95 = vmatprep.subr.mxu0 0.0
    %96 = vmatpush1.msra.mxu0 0.0
    %97 = vmatprep.subr.mxu0 0.0
    %98 = vmatpush1.msra.mxu0 0.0
    %99 = vmatprep.subr.mxu0 0.0
    %100 = vmatpush1.msra.mxu0 0.0
    %101 = vmatprep.subr.mxu0 0.0
    %102 = vmatpush1.msra.mxu0 0.0
    %103 = vmatprep.subr.mxu0 0.0
    %104 = vmatpush1.msra.mxu0 0.0
    %105 = vmatprep.subr.mxu0 0.0
    %106 = vmatpush1.msra.mxu0 0.0
    %107 = vmatprep.subr.mxu0 0.0
    %108 = vmatpush1.msra.mxu0 0.0
    %109 = vmatprep.subr.mxu0 0.0
    %110 = vmatpush1.msra.mxu0 0.0
    %111 = vmatprep.subr.mxu0 0.0
    %112 = vmatpush1.msra.mxu0 0.0
    %113 = vmatprep.subr.mxu0 0.0
    %114 = vmatpush1.msra.mxu0 0.0
    %115 = vmatprep.subr.mxu0 0.0
    %116 = vmatpush1.msra.mxu0 0.0
    %117 = vmatprep.subr.mxu0 0.0
    %118 = vmatpush1.msra.mxu0 0.0
    %119 = vmatprep.subr.mxu0 0.0
    %120 = vmatpush1.msra.mxu0 0.0
    %121 = vmatprep.subr.mxu0 0.0
    %122 = vmatpush1.msra.mxu0 0.0
    %123 = vmatprep.subr.mxu0 0.0
    %124 = vmatpush1.msra.mxu0 0.0
    %125 = vmatprep.subr.mxu0 0.0
    %126 = vmatpush1.msra.mxu0 0.0
    %127 = vmatprep.subr.mxu0 0.0
    %128 = vmatpush1.msra.mxu0 0.0
    %129 = vmatprep.mubr.f32.mxu0 0.0
    %130 = vmatmul.mubr.f32.gmra.mrb[0].mxu0 %v60
    %v131 = vpop.f32.mrb[0].mxu0
    %v132 = vadd.f32 %v56, %v131
    %v133 = vpop.f32.mrb[0].mxu0
    %134 = vmatprep.mubr.f32.mxu0 0.0
    %135 = vmatmul.mubr.f32.gmra.mrb[0].mxu0 %v63
    %v136 = vpop.f32.mrb[0].mxu0
    %v137 = vadd.f32 %v56, %v136
    %v138 = vpop.f32.mrb[0].mxu0
    %139 = vdwg.mxu0
    %142 = vrot.lane.b32.xlu0 %v132, 104
    %v143 = vpop.permute.xlu0 %142
    %144 = vrot.lane.b32.xlu0 %v137, 104
    %v145 = vpop.permute.xlu0 %144
    %146 = vrot.lane.b32.xlu0 %v132, 80
    %v147 = vpop.permute.xlu0 %146
    %148 = vrot.lane.b32.xlu0 %v137, 80
    %v149 = vpop.permute.xlu0 %148
    %150 = vrot.lane.b32.xlu0 %v132, 56
    %v151 = vpop.permute.xlu0 %150
    %152 = vrot.lane.b32.xlu0 %v137, 56
    %v153 = vpop.permute.xlu0 %152
    %v154 = vlaneseq
    %v155 = vshrl.u32 %v154, 7
    %v156 = vadd.s32 %v155, 8
    %v157 = vadd.s32 %v155, 16
    %v158 = vadd.s32 %v155, 24
    %v159 = vadd.s32 %v155, 32
    %v160 = vadd.s32 %v155, 40
    %v161 = vadd.s32 %v155, 48
    %v162 = vadd.s32 %v155, 56
    %v163 = vlaneseq
    %v164 = vand.u32 %v163, 127
    %v165 = vshra.s32 %v155, 4
    %v166 = vshra.s32 %v156, 4
    %v167 = vshra.s32 %v157, 4
    %v168 = vshra.s32 %v158, 4
    %v169 = vshra.s32 %v159, 4
    %v170 = vshra.s32 %v160, 4
    %v171 = vshra.s32 %v161, 4
    %v172 = vshra.s32 %v162, 4
    %v173 = vshra.s32 %v164, 4
    %vm174 = vcmp.eq.s32.totalorder %v165, %v173
    %vm175 = vcmp.eq.s32.totalorder %v166, %v173
    %vm176 = vcmp.eq.s32.totalorder %v167, %v173
    %vm177 = vcmp.eq.s32.totalorder %v168, %v173
    %vm178 = vcmp.eq.s32.totalorder %v169, %v173
    %vm179 = vcmp.eq.s32.totalorder %v170, %v173
    %vm180 = vcmp.eq.s32.totalorder %v171, %v173
    %vm181 = vcmp.eq.s32.totalorder %v172, %v173
    %v182 = vand.u32 %v155, 1
    %v183 = vand.u32 %v156, 1
    %v184 = vand.u32 %v157, 1
    %v185 = vand.u32 %v158, 1
    %v186 = vand.u32 %v159, 1
    %v187 = vand.u32 %v160, 1
    %v188 = vand.u32 %v161, 1
    %v189 = vand.u32 %v162, 1
    %v190 = vand.u32 %v164, 1
    %vm191 = vcmp.eq.s32.totalorder %v182, %v190
    %vm192 = vcmp.eq.s32.totalorder %v183, %v190
    %vm193 = vcmp.eq.s32.totalorder %v184, %v190
    %vm194 = vcmp.eq.s32.totalorder %v185, %v190
    %vm195 = vcmp.eq.s32.totalorder %v186, %v190
    %vm196 = vcmp.eq.s32.totalorder %v187, %v190
    %vm197 = vcmp.eq.s32.totalorder %v188, %v190
    %vm198 = vcmp.eq.s32.totalorder %v189, %v190
    %vm199 = vmand %vm174, %vm191
    %vm200 = vmand %vm175, %vm192
    %vm201 = vmand %vm176, %vm193
    %vm202 = vmand %vm177, %vm194
    %vm203 = vmand %vm178, %vm195
    %vm204 = vmand %vm179, %vm196
    %vm205 = vmand %vm180, %vm197
    %vm206 = vmand %vm181, %vm198
    %v207 = vsel %vm199, 0.0, -1e+30
    %v208 = vsel %vm200, 0.0, -1e+30
    %v209 = vsel %vm201, 0.0, -1e+30
    %v210 = vsel %vm202, 0.0, -1e+30
    %v211 = vsel %vm203, 0.0, -1e+30
    %v212 = vsel %vm204, 0.0, -1e+30
    %v213 = vsel %vm205, 0.0, -1e+30
    %v214 = vsel %vm206, 0.0, -1e+30
    %215 = vrot.lane.b32.xlu0 %v132, 120
    %v216 = vpop.permute.xlu0 %215
    %217 = vrot.lane.b32.xlu0 %v137, 120
    %v218 = vpop.permute.xlu0 %217
    %219 = vrot.lane.b32.xlu0 %v143, 120
    %v220 = vpop.permute.xlu0 %219
    %221 = vrot.lane.b32.xlu0 %v145, 120
    %v222 = vpop.permute.xlu0 %221
    %223 = vrot.lane.b32.xlu0 %v147, 120
    %v224 = vpop.permute.xlu0 %223
    %225 = vrot.lane.b32.xlu0 %v149, 120
    %v226 = vpop.permute.xlu0 %225
    %227 = vrot.lane.b32.xlu0 %v151, 120
    %v228 = vpop.permute.xlu0 %227
    %229 = vrot.lane.b32.xlu0 %v153, 120
    %v230 = vpop.permute.xlu0 %229
    %vm231 = vcmask 64512
    %v232 = vsel %vm231, %v132, 0
    %v234 = vsel %vm231, %v137, 0
    %v236 = vsel %vm231, %v143, 0
    %v238 = vsel %vm231, %v145, 0
    %v240 = vsel %vm231, %v147, 0
    %v242 = vsel %vm231, %v149, 0
    %v244 = vsel %vm231, %v151, 0
    %v246 = vsel %vm231, %v153, 0
    %v248 = vsel %vm231, %v216, 0
    %v250 = vsel %vm231, %v218, 0
    %v252 = vsel %vm231, %v220, 0
    %v254 = vsel %vm231, %v222, 0
    %v256 = vsel %vm231, %v224, 0
    %v258 = vsel %vm231, %v226, 0
    %v260 = vsel %vm231, %v228, 0
    %v262 = vsel %vm231, %v230, 0
    %264 = vmatprep.subr.mxu0 0.0
    %265 = vmatpush1.xpose.msra.mxu0 %v248
    %266 = vmatprep.subr.mxu0 0.0
    %267 = vmatpush1.xpose.msra.mxu0 %v250
    %268 = vmatprep.subr.mxu0 0.0
    %269 = vmatpush1.xpose.msra.mxu0 %v252
    %270 = vmatprep.subr.mxu0 0.0
    %271 = vmatpush1.xpose.msra.mxu0 %v254
    %272 = vmatprep.subr.mxu0 0.0
    %273 = vmatpush1.xpose.msra.mxu0 %v256
    %274 = vmatprep.subr.mxu0 0.0
    %275 = vmatpush1.xpose.msra.mxu0 %v258
    %276 = vmatprep.subr.mxu0 0.0
    %277 = vmatpush1.xpose.msra.mxu0 %v260
    %278 = vmatprep.subr.mxu0 0.0
    %279 = vmatpush1.xpose.msra.mxu0 %v262
    %280 = vmatprep.subr.mxu0 0.0
    %281 = vmatpush1.xpose.msra.mxu0 0.0
    %282 = vmatprep.subr.mxu0 0.0
    %283 = vmatpush1.xpose.msra.mxu0 0.0
    %284 = vmatprep.subr.mxu0 0.0
    %285 = vmatpush1.xpose.msra.mxu0 0.0
    %286 = vmatprep.subr.mxu0 0.0
    %287 = vmatpush1.xpose.msra.mxu0 0.0
    %288 = vmatprep.subr.mxu0 0.0
    %289 = vmatpush1.xpose.msra.mxu0 0.0
    %290 = vmatprep.subr.mxu0 0.0
    %291 = vmatpush1.xpose.msra.mxu0 0.0
    %292 = vmatprep.subr.mxu0 0.0
    %293 = vmatpush1.xpose.msra.mxu0 0.0
    %294 = vmatprep.subr.mxu0 0.0
    %295 = vmatpush1.xpose.msra.mxu0 0.0
    %296 = vmatprep.subr.mxu0 0.0
    %297 = vmatpush1.xpose.msra.mxu0 0.0
    %298 = vmatprep.subr.mxu0 0.0
    %299 = vmatpush1.xpose.msra.mxu0 0.0
    %300 = vmatprep.subr.mxu0 0.0
    %301 = vmatpush1.xpose.msra.mxu0 0.0
    %302 = vmatprep.subr.mxu0 0.0
    %303 = vmatpush1.xpose.msra.mxu0 0.0
    %304 = vmatprep.subr.mxu0 0.0
    %305 = vmatpush1.xpose.msra.mxu0 0.0
    %306 = vmatprep.subr.mxu0 0.0
    %307 = vmatpush1.xpose.msra.mxu0 0.0
    %308 = vmatprep.subr.mxu0 0.0
    %309 = vmatpush1.xpose.msra.mxu0 0.0
    %310 = vmatprep.subr.mxu0 0.0
    %311 = vmatpush1.xpose.msra.mxu0 0.0
    %312 = vmatprep.subr.mxu0 0.0
    %313 = vmatpush1.xpose.msra.mxu0 0.0
    %314 = vmatprep.subr.mxu0 0.0
    %315 = vmatpush1.xpose.msra.mxu0 0.0
    %316 = vmatprep.subr.mxu0 0.0
    %317 = vmatpush1.xpose.msra.mxu0 0.0
    %318 = vmatprep.subr.mxu0 0.0
    %319 = vmatpush1.xpose.msra.mxu0 0.0
    %320 = vmatprep.subr.mxu0 0.0
    %321 = vmatpush1.xpose.msra.mxu0 0.0
    %322 = vmatprep.subr.mxu0 0.0
    %323 = vmatpush1.xpose.msra.mxu0 0.0
    %324 = vmatprep.subr.mxu0 0.0
    %325 = vmatpush1.xpose.msra.mxu0 0.0
    %326 = vmatprep.subr.mxu0 0.0
    %327 = vmatpush1.xpose.msra.mxu0 0.0
    %328 = vmatprep.mubr.f32.mxu0 0.0
    %329 = vmatmul.mubr.f32.gmra.mrb[0].mxu0 %v232
    %v330 = vpop.f32.mrb[0].mxu0
    %v331 = vadd.f32 %v207, %v330
    %v332 = vpop.f32.mrb[0].mxu0
    %333 = vmatprep.mubr.f32.mxu0 0.0
    %334 = vmatmul.mubr.f32.gmra.mrb[0].mxu0 %v234
    %v335 = vpop.f32.mrb[0].mxu0
    %v336 = vadd.f32 %v208, %v335
    %v337 = vpop.f32.mrb[0].mxu0
    %338 = vmatprep.mubr.f32.mxu0 0.0
    %339 = vmatmul.mubr.f32.gmra.mrb[0].mxu0 %v236
    %v340 = vpop.f32.mrb[0].mxu0
    %v341 = vadd.f32 %v209, %v340
    %v342 = vpop.f32.mrb[0].mxu0
    %343 = vmatprep.mubr.f32.mxu0 0.0
    %344 = vmatmul.mubr.f32.gmra.mrb[0].mxu0 %v238
    %v345 = vpop.f32.mrb[0].mxu0
    %v346 = vadd.f32 %v210, %v345
    %v347 = vpop.f32.mrb[0].mxu0
    %348 = vmatprep.mubr.f32.mxu0 0.0
    %349 = vmatmul.mubr.f32.gmra.mrb[0].mxu0 %v240
    %v350 = vpop.f32.mrb[0].mxu0
    %v351 = vadd.f32 %v211, %v350
    %v352 = vpop.f32.mrb[0].mxu0
    %353 = vmatprep.mubr.f32.mxu0 0.0
    %354 = vmatmul.mubr.f32.gmra.mrb[0].mxu0 %v242
    %v355 = vpop.f32.mrb[0].mxu0
    %v356 = vadd.f32 %v212, %v355
    %v357 = vpop.f32.mrb[0].mxu0
    %358 = vmatprep.mubr.f32.mxu0 0.0
    %359 = vmatmul.mubr.f32.gmra.mrb[0].mxu0 %v244
    %v360 = vpop.f32.mrb[0].mxu0
    %v361 = vadd.f32 %v213, %v360
    %v362 = vpop.f32.mrb[0].mxu0
    %363 = vmatprep.mubr.f32.mxu0 0.0
    %364 = vmatmul.mubr.f32.gmra.mrb[0].mxu0 %v246
    %v365 = vpop.f32.mrb[0].mxu0
    %v366 = vadd.f32 %v214, %v365
    %v367 = vpop.f32.mrb[0].mxu0
    %368 = vdwg.mxu0
    %vm369 = vcmask 523264
    %v370 = vsel %vm369, %v331, -inf
    %371 = vmax.xlane.f32.xlu0 %v370
    %v372 = vpop.xlane.xlu0 %371
    %v373 = vsel %vm369, %v336, -inf
    %374 = vmax.xlane.f32.xlu0 %v373
    %v375 = vpop.xlane.xlu0 %374
    %v376 = vsel %vm369, %v341, -inf
    %377 = vmax.xlane.f32.xlu0 %v376
    %v378 = vpop.xlane.xlu0 %377
    %v379 = vsel %vm369, %v346, -inf
    %380 = vmax.xlane.f32.xlu0 %v379
    %v381 = vpop.xlane.xlu0 %380
    %v382 = vsel %vm369, %v351, -inf
    %383 = vmax.xlane.f32.xlu0 %v382
    %v384 = vpop.xlane.xlu0 %383
    %v385 = vsel %vm369, %v356, -inf
    %386 = vmax.xlane.f32.xlu0 %v385
    %v387 = vpop.xlane.xlu0 %386
    %v388 = vsel %vm369, %v361, -inf
    %389 = vmax.xlane.f32.xlu0 %v388
    %v390 = vpop.xlane.xlu0 %389
    %v391 = vsel %vm369, %v366, -inf
    %392 = vmax.xlane.f32.xlu0 %v391
    %v393 = vpop.xlane.xlu0 %392
    %v394 = vsub.f32 %v331, %v372
    %v395 = vsub.f32 %v336, %v375
    %v396 = vsub.f32 %v341, %v378
    %v397 = vsub.f32 %v346, %v381
    %v398 = vsub.f32 %v351, %v384
    %v399 = vsub.f32 %v356, %v387
    %v400 = vsub.f32 %v361, %v390
    %v401 = vsub.f32 %v366, %v393
    %v402 = vmul.f32 %v394, 1.442695
    %v403 = vpow.pop %v402
    %v404 = vmul.f32 %v395, 1.442695
    %v405 = vpow.pop %v404
    %v406 = vmul.f32 %v396, 1.442695
    %v407 = vpow.pop %v406
    %v408 = vmul.f32 %v397, 1.442695
    %v409 = vpow.pop %v408
    %v410 = vmul.f32 %v398, 1.442695
    %v411 = vpow.pop %v410
    %v412 = vmul.f32 %v399, 1.442695
    %v413 = vpow.pop %v412
    %v414 = vmul.f32 %v400, 1.442695
    %v415 = vpow.pop %v414
    %v416 = vmul.f32 %v401, 1.442695
    %v417 = vpow.pop %v416
    %v418 = vsel %vm369, %v403, 0.0
    %419 = vadd.xlane.f32.xlu0 %v418
    %v420 = vpop.xlane.xlu0 %419
    %v421 = vsel %vm369, %v405, 0.0
    %422 = vadd.xlane.f32.xlu0 %v421
    %v423 = vpop.xlane.xlu0 %422
    %v424 = vsel %vm369, %v407, 0.0
    %425 = vadd.xlane.f32.xlu0 %v424
    %v426 = vpop.xlane.xlu0 %425
    %v427 = vsel %vm369, %v409, 0.0
    %428 = vadd.xlane.f32.xlu0 %v427
    %v429 = vpop.xlane.xlu0 %428
    %v430 = vsel %vm369, %v411, 0.0
    %431 = vadd.xlane.f32.xlu0 %v430
    %v432 = vpop.xlane.xlu0 %431
    %v433 = vsel %vm369, %v413, 0.0
    %434 = vadd.xlane.f32.xlu0 %v433
    %v435 = vpop.xlane.xlu0 %434
    %v436 = vsel %vm369, %v415, 0.0
    %437 = vadd.xlane.f32.xlu0 %v436
    %v438 = vpop.xlane.xlu0 %437
    %v439 = vsel %vm369, %v417, 0.0
    %440 = vadd.xlane.f32.xlu0 %v439
    %v441 = vpop.xlane.xlu0 %440
    %v442 = vrcp.pop %v420
    %v443 = vrcp.pop %v423
    %v444 = vrcp.pop %v426
    %v445 = vrcp.pop %v429
    %v446 = vrcp.pop %v432
    %v447 = vrcp.pop %v435
    %v448 = vrcp.pop %v438
    %v449 = vrcp.pop %v441
    %v450 = vmul.f32 %v403, %v442
    %v451 = vmul.f32 %v405, %v443
    %v452 = vmul.f32 %v407, %v444
    %v453 = vmul.f32 %v409, %v445
    %v454 = vmul.f32 %v411, %v446
    %v455 = vmul.f32 %v413, %v447
    %v456 = vmul.f32 %v415, %v448
    %v457 = vmul.f32 %v417, %v449
    %458 = vrot.lane.b32.xlu0 %v132, 112
    %v459 = vpop.permute.xlu0 %458
    %460 = vrot.lane.b32.xlu0 %v137, 112
    %v461 = vpop.permute.xlu0 %460
    %462 = vrot.lane.b32.xlu0 %v143, 112
    %v463 = vpop.permute.xlu0 %462
    %464 = vrot.lane.b32.xlu0 %v145, 112
    %v465 = vpop.permute.xlu0 %464
    %466 = vrot.lane.b32.xlu0 %v147, 112
    %v467 = vpop.permute.xlu0 %466
    %468 = vrot.lane.b32.xlu0 %v149, 112
    %v469 = vpop.permute.xlu0 %468
    %470 = vrot.lane.b32.xlu0 %v151, 112
    %v471 = vpop.permute.xlu0 %470
    %472 = vrot.lane.b32.xlu0 %v153, 112
    %v473 = vpop.permute.xlu0 %472
    %v483 = vsel %vm369, %v450, 0
    %v486 = vsel %vm369, %v451, 0
    %v489 = vsel %vm369, %v452, 0
    %v492 = vsel %vm369, %v453, 0
    %v495 = vsel %vm369, %v454, 0
    %v498 = vsel %vm369, %v455, 0
    %v501 = vsel %vm369, %v456, 0
    %v504 = vsel %vm369, %v457, 0
    %506 = vmatprep.subr.mxu0 0.0
    %507 = vmatpush1.msra.mxu0 %v459
    %508 = vmatprep.subr.mxu0 0.0
    %509 = vmatpush1.msra.mxu0 %v461
    %510 = vmatprep.subr.mxu0 0.0
    %511 = vmatpush1.msra.mxu0 %v463
    %512 = vmatprep.subr.mxu0 0.0
    %513 = vmatpush1.msra.mxu0 %v465
    %514 = vmatprep.subr.mxu0 0.0
    %515 = vmatpush1.msra.mxu0 %v467
    %516 = vmatprep.subr.mxu0 0.0
    %517 = vmatpush1.msra.mxu0 %v469
    %518 = vmatprep.subr.mxu0 0.0
    %519 = vmatpush1.msra.mxu0 %v471
    %520 = vmatprep.subr.mxu0 0.0
    %521 = vmatpush1.msra.mxu0 %v473
    %522 = vmatprep.subr.mxu0 0.0
    %523 = vmatpush1.msra.mxu0 0.0
    %524 = vmatprep.subr.mxu0 0.0
    %525 = vmatpush1.msra.mxu0 0.0
    %526 = vmatprep.subr.mxu0 0.0
    %527 = vmatpush1.msra.mxu0 0.0
    %528 = vmatprep.subr.mxu0 0.0
    %529 = vmatpush1.msra.mxu0 0.0
    %530 = vmatprep.subr.mxu0 0.0
    %531 = vmatpush1.msra.mxu0 0.0
    %532 = vmatprep.subr.mxu0 0.0
    %533 = vmatpush1.msra.mxu0 0.0
    %534 = vmatprep.subr.mxu0 0.0
    %535 = vmatpush1.msra.mxu0 0.0
    %536 = vmatprep.subr.mxu0 0.0
    %537 = vmatpush1.msra.mxu0 0.0
    %538 = vmatprep.subr.mxu0 0.0
    %539 = vmatpush1.msra.mxu0 0.0
    %540 = vmatprep.subr.mxu0 0.0
    %541 = vmatpush1.msra.mxu0 0.0
    %542 = vmatprep.subr.mxu0 0.0
    %543 = vmatpush1.msra.mxu0 0.0
    %544 = vmatprep.subr.mxu0 0.0
    %545 = vmatpush1.msra.mxu0 0.0
    %546 = vmatprep.subr.mxu0 0.0
    %547 = vmatpush1.msra.mxu0 0.0
    %548 = vmatprep.subr.mxu0 0.0
    %549 = vmatpush1.msra.mxu0 0.0
    %550 = vmatprep.subr.mxu0 0.0
    %551 = vmatpush1.msra.mxu0 0.0
    %552 = vmatprep.subr.mxu0 0.0
    %553 = vmatpush1.msra.mxu0 0.0
    %554 = vmatprep.subr.mxu0 0.0
    %555 = vmatpush1.msra.mxu0 0.0
    %556 = vmatprep.subr.mxu0 0.0
    %557 = vmatpush1.msra.mxu0 0.0
    %558 = vmatprep.subr.mxu0 0.0
    %559 = vmatpush1.msra.mxu0 0.0
    %560 = vmatprep.subr.mxu0 0.0
    %561 = vmatpush1.msra.mxu0 0.0
    %562 = vmatprep.subr.mxu0 0.0
    %563 = vmatpush1.msra.mxu0 0.0
    %564 = vmatprep.subr.mxu0 0.0
    %565 = vmatpush1.msra.mxu0 0.0
    %566 = vmatprep.subr.mxu0 0.0
    %567 = vmatpush1.msra.mxu0 0.0
    %568 = vmatprep.subr.mxu0 0.0
    %569 = vmatpush1.msra.mxu0 0.0
    %570 = vmatprep.mubr.f32.mxu0 0.0
    %571 = vmatmul.mubr.f32.gmra.mrb[0].mxu0 %v483
    %v572 = vpop.f32.mrb[0].mxu0
    %v573 = vadd.f32 0.0, %v572
    %v574 = vpop.f32.mrb[0].mxu0
    %575 = vmatprep.mubr.f32.mxu0 0.0
    %576 = vmatmul.mubr.f32.gmra.mrb[0].mxu0 %v486
    %v577 = vpop.f32.mrb[0].mxu0
    %v578 = vadd.f32 0.0, %v577
    %v579 = vpop.f32.mrb[0].mxu0
    %580 = vmatprep.mubr.f32.mxu0 0.0
    %581 = vmatmul.mubr.f32.gmra.mrb[0].mxu0 %v489
    %v582 = vpop.f32.mrb[0].mxu0
    %v583 = vadd.f32 0.0, %v582
    %v584 = vpop.f32.mrb[0].mxu0
    %585 = vmatprep.mubr.f32.mxu0 0.0
    %586 = vmatmul.mubr.f32.gmra.mrb[0].mxu0 %v492
    %v587 = vpop.f32.mrb[0].mxu0
    %v588 = vadd.f32 0.0, %v587
    %v589 = vpop.f32.mrb[0].mxu0
    %590 = vmatprep.mubr.f32.mxu0 0.0
    %591 = vmatmul.mubr.f32.gmra.mrb[0].mxu0 %v495
    %v592 = vpop.f32.mrb[0].mxu0
    %v593 = vadd.f32 0.0, %v592
    %v594 = vpop.f32.mrb[0].mxu0
    %595 = vmatprep.mubr.f32.mxu0 0.0
    %596 = vmatmul.mubr.f32.gmra.mrb[0].mxu0 %v498
    %v597 = vpop.f32.mrb[0].mxu0
    %v598 = vadd.f32 0.0, %v597
    %v599 = vpop.f32.mrb[0].mxu0
    %600 = vmatprep.mubr.f32.mxu0 0.0
    %601 = vmatmul.mubr.f32.gmra.mrb[0].mxu0 %v501
    %v602 = vpop.f32.mrb[0].mxu0
    %v603 = vadd.f32 0.0, %v602
    %v604 = vpop.f32.mrb[0].mxu0
    %605 = vmatprep.mubr.f32.mxu0 0.0
    %606 = vmatmul.mubr.f32.gmra.mrb[0].mxu0 %v504
    %v607 = vpop.f32.mrb[0].mxu0
    %v608 = vadd.f32 0.0, %v607
    %v609 = vpop.f32.mrb[0].mxu0
    %610 = vdwg.mxu0
    %613 = vrot.lane.b32.xlu0 %v583, 8
    %v614 = vpop.permute.xlu0 %613
    %615 = vrot.lane.b32.xlu0 %v588, 8
    %v616 = vpop.permute.xlu0 %615
    %621 = vrot.lane.b32.xlu0 %v593, 16
    %v622 = vpop.permute.xlu0 %621
    %623 = vrot.lane.b32.xlu0 %v598, 16
    %v624 = vpop.permute.xlu0 %623
    %629 = vrot.lane.b32.xlu0 %v603, 24
    %v630 = vpop.permute.xlu0 %629
    %631 = vrot.lane.b32.xlu0 %v608, 24
    %v632 = vpop.permute.xlu0 %631
    %v635 = vsel %vm231, %v573, %v614
    %v636 = vsel %vm231, %v578, %v616
    %vm637 = vcmask 130048
    %v638 = vsel %vm637, %v635, %v622
    %v639 = vsel %vm637, %v636, %v624
    %vm640 = vcmask 195584
    %v641 = vsel %vm640, %v638, %v630
    %v642 = vsel %vm640, %v639, %v632
    %v643 = vld [vmem:[%s3] sm:$0xff]
    %v644 = vld [vmem:[%s3 + $0x8] sm:$0xff]
    %v645 = vld [vmem:[%s3 + $0x10] sm:$0xff]
    %v646 = vld [vmem:[%s3 + $0x18] sm:$0xff]
    %v647 = vlaneseq
    %v648 = vshrl.u32 %v647, 7
    %v649 = vsub.s32 0, %v648
    %v650 = vrot.slane %v46, %v649
    %v652 = vsel %vm58, %v641, 0
    %v655 = vsel %vm58, %v642, 0
    %657 = vmatprep.subr.mxu0 0.0
    %658 = vmatpush1.msra.mxu0 %v643
    %659 = vmatprep.subr.mxu0 0.0
    %660 = vmatpush1.msra.mxu0 %v644
    %661 = vmatprep.subr.mxu0 0.0
    %662 = vmatpush1.msra.mxu0 %v645
    %663 = vmatprep.subr.mxu0 0.0
    %664 = vmatpush1.msra.mxu0 %v646
    %665 = vmatprep.subr.mxu0 0.0
    %666 = vmatpush1.msra.mxu0 0.0
    %667 = vmatprep.subr.mxu0 0.0
    %668 = vmatpush1.msra.mxu0 0.0
    %669 = vmatprep.subr.mxu0 0.0
    %670 = vmatpush1.msra.mxu0 0.0
    %671 = vmatprep.subr.mxu0 0.0
    %672 = vmatpush1.msra.mxu0 0.0
    %673 = vmatprep.subr.mxu0 0.0
    %674 = vmatpush1.msra.mxu0 0.0
    %675 = vmatprep.subr.mxu0 0.0
    %676 = vmatpush1.msra.mxu0 0.0
    %677 = vmatprep.subr.mxu0 0.0
    %678 = vmatpush1.msra.mxu0 0.0
    %679 = vmatprep.subr.mxu0 0.0
    %680 = vmatpush1.msra.mxu0 0.0
    %681 = vmatprep.subr.mxu0 0.0
    %682 = vmatpush1.msra.mxu0 0.0
    %683 = vmatprep.subr.mxu0 0.0
    %684 = vmatpush1.msra.mxu0 0.0
    %685 = vmatprep.subr.mxu0 0.0
    %686 = vmatpush1.msra.mxu0 0.0
    %687 = vmatprep.subr.mxu0 0.0
    %688 = vmatpush1.msra.mxu0 0.0
    %689 = vmatprep.subr.mxu0 0.0
    %690 = vmatpush1.msra.mxu0 0.0
    %691 = vmatprep.subr.mxu0 0.0
    %692 = vmatpush1.msra.mxu0 0.0
    %693 = vmatprep.subr.mxu0 0.0
    %694 = vmatpush1.msra.mxu0 0.0
    %695 = vmatprep.subr.mxu0 0.0
    %696 = vmatpush1.msra.mxu0 0.0
    %697 = vmatprep.subr.mxu0 0.0
    %698 = vmatpush1.msra.mxu0 0.0
    %699 = vmatprep.subr.mxu0 0.0
    %700 = vmatpush1.msra.mxu0 0.0
    %701 = vmatprep.subr.mxu0 0.0
    %702 = vmatpush1.msra.mxu0 0.0
    %703 = vmatprep.subr.mxu0 0.0
    %704 = vmatpush1.msra.mxu0 0.0
    %705 = vmatprep.subr.mxu0 0.0
    %706 = vmatpush1.msra.mxu0 0.0
    %707 = vmatprep.subr.mxu0 0.0
    %708 = vmatpush1.msra.mxu0 0.0
    %709 = vmatprep.subr.mxu0 0.0
    %710 = vmatpush1.msra.mxu0 0.0
    %711 = vmatprep.subr.mxu0 0.0
    %712 = vmatpush1.msra.mxu0 0.0
    %713 = vmatprep.subr.mxu0 0.0
    %714 = vmatpush1.msra.mxu0 0.0
    %715 = vmatprep.subr.mxu0 0.0
    %716 = vmatpush1.msra.mxu0 0.0
    %717 = vmatprep.subr.mxu0 0.0
    %718 = vmatpush1.msra.mxu0 0.0
    %719 = vmatprep.subr.mxu0 0.0
    %720 = vmatpush1.msra.mxu0 0.0
    %721 = vmatprep.mubr.f32.mxu0 0.0
    %722 = vmatmul.mubr.f32.gmra.mrb[0].mxu0 %v652
    %v723 = vpop.f32.mrb[0].mxu0
    %v724 = vadd.f32 %v650, %v723
    %v725 = vpop.f32.mrb[0].mxu0
    %726 = vmatprep.mubr.f32.mxu0 0.0
    %727 = vmatmul.mubr.f32.gmra.mrb[0].mxu0 %v655
    %v728 = vpop.f32.mrb[0].mxu0
    %v729 = vadd.f32 %v650, %v728
    %v730 = vpop.f32.mrb[0].mxu0
    %731 = vdwg.mxu0
    %v732 = vadd.f32 %v44, %v724
    %v733 = vadd.f32 %v45, %v729
    %v734 = vsel %vm58, %v732, 0.0
    %735 = vadd.xlane.f32.xlu0 %v734
    %v736 = vpop.xlane.xlu0 %735
    %v737 = vsel %vm58, %v733, 0.0
    %738 = vadd.xlane.f32.xlu0 %v737
    %v739 = vpop.xlane.xlu0 %738
    %v740 = vrcp.pop 32.0
    %v741 = vmul.f32 %v736, %v740
    %v742 = vmul.f32 %v739, %v740
    %v743 = vsub.f32 %v732, %v741
    %v744 = vsub.f32 %v733, %v742
    %v745 = vmul.f32 %v743, %v743
    %v746 = vmul.f32 %v744, %v744
    %v747 = vsel %vm58, %v745, 0.0
    %748 = vadd.xlane.f32.xlu0 %v747
    %v749 = vpop.xlane.xlu0 %748
    %v750 = vsel %vm58, %v746, 0.0
    %751 = vadd.xlane.f32.xlu0 %v750
    %v752 = vpop.xlane.xlu0 %751
    %v753 = vmul.f32 %v749, %v740
    %v754 = vmul.f32 %v752, %v740
    %v755 = vadd.f32 %v753, 1e-05
    %v756 = vadd.f32 %v754, 1e-05
    %v757 = vrsqrt.pop %v755
    %v758 = vrsqrt.pop %v756
    %v759 = vmul.f32 %v743, %v757
    %v760 = vmul.f32 %v744, %v758
    %v761 = vlaneseq
    %v762 = vshrl.u32 %v761, 7
    %v763 = vsub.s32 2, %v762
    %v764 = vrot.slane %v46, %v763
    %v765 = vmul.f32 %v759, %v764
    %v766 = vmul.f32 %v760, %v764
    %v767 = vlaneseq
    %v768 = vshrl.u32 %v767, 7
    %v769 = vsub.s32 3, %v768
    %v770 = vrot.slane %v46, %v769
    %v771 = vadd.f32 %v765, %v770
    %v772 = vadd.f32 %v766, %v770
    %v773 = vld [vmem:[%s4] sm:$0xff]
    %v774 = vld [vmem:[%s4 + $0x8] sm:$0xff]
    %v775 = vld [vmem:[%s4 + $0x10] sm:$0xff]
    %v776 = vld [vmem:[%s4 + $0x18] sm:$0xff]
    %v777 = vld [vmem:[%s5] sm:$0x1]
    %v779 = vlaneseq
    %v780 = vshrl.u32 %v779, 7
    %v781 = vsub.s32 0, %v780
    %v782 = vrot.slane %v777, %v781
    %v785 = vsel %vm58, %v771, 0
    %v788 = vsel %vm58, %v772, 0
    %790 = vmatprep.subr.mxu0 0.0
    %791 = vmatpush1.msra.mxu0 %v773
    %792 = vmatprep.subr.mxu0 0.0
    %793 = vmatpush1.msra.mxu0 %v774
    %794 = vmatprep.subr.mxu0 0.0
    %795 = vmatpush1.msra.mxu0 %v775
    %796 = vmatprep.subr.mxu0 0.0
    %797 = vmatpush1.msra.mxu0 %v776
    %798 = vmatprep.subr.mxu0 0.0
    %799 = vmatpush1.msra.mxu0 0.0
    %800 = vmatprep.subr.mxu0 0.0
    %801 = vmatpush1.msra.mxu0 0.0
    %802 = vmatprep.subr.mxu0 0.0
    %803 = vmatpush1.msra.mxu0 0.0
    %804 = vmatprep.subr.mxu0 0.0
    %805 = vmatpush1.msra.mxu0 0.0
    %806 = vmatprep.subr.mxu0 0.0
    %807 = vmatpush1.msra.mxu0 0.0
    %808 = vmatprep.subr.mxu0 0.0
    %809 = vmatpush1.msra.mxu0 0.0
    %810 = vmatprep.subr.mxu0 0.0
    %811 = vmatpush1.msra.mxu0 0.0
    %812 = vmatprep.subr.mxu0 0.0
    %813 = vmatpush1.msra.mxu0 0.0
    %814 = vmatprep.subr.mxu0 0.0
    %815 = vmatpush1.msra.mxu0 0.0
    %816 = vmatprep.subr.mxu0 0.0
    %817 = vmatpush1.msra.mxu0 0.0
    %818 = vmatprep.subr.mxu0 0.0
    %819 = vmatpush1.msra.mxu0 0.0
    %820 = vmatprep.subr.mxu0 0.0
    %821 = vmatpush1.msra.mxu0 0.0
    %822 = vmatprep.subr.mxu0 0.0
    %823 = vmatpush1.msra.mxu0 0.0
    %824 = vmatprep.subr.mxu0 0.0
    %825 = vmatpush1.msra.mxu0 0.0
    %826 = vmatprep.subr.mxu0 0.0
    %827 = vmatpush1.msra.mxu0 0.0
    %828 = vmatprep.subr.mxu0 0.0
    %829 = vmatpush1.msra.mxu0 0.0
    %830 = vmatprep.subr.mxu0 0.0
    %831 = vmatpush1.msra.mxu0 0.0
    %832 = vmatprep.subr.mxu0 0.0
    %833 = vmatpush1.msra.mxu0 0.0
    %834 = vmatprep.subr.mxu0 0.0
    %835 = vmatpush1.msra.mxu0 0.0
    %836 = vmatprep.subr.mxu0 0.0
    %837 = vmatpush1.msra.mxu0 0.0
    %838 = vmatprep.subr.mxu0 0.0
    %839 = vmatpush1.msra.mxu0 0.0
    %840 = vmatprep.subr.mxu0 0.0
    %841 = vmatpush1.msra.mxu0 0.0
    %842 = vmatprep.subr.mxu0 0.0
    %843 = vmatpush1.msra.mxu0 0.0
    %844 = vmatprep.subr.mxu0 0.0
    %845 = vmatpush1.msra.mxu0 0.0
    %846 = vmatprep.subr.mxu0 0.0
    %847 = vmatpush1.msra.mxu0 0.0
    %848 = vmatprep.subr.mxu0 0.0
    %849 = vmatpush1.msra.mxu0 0.0
    %850 = vmatprep.subr.mxu0 0.0
    %851 = vmatpush1.msra.mxu0 0.0
    %852 = vmatprep.subr.mxu0 0.0
    %853 = vmatpush1.msra.mxu0 0.0
    %854 = vmatprep.mubr.f32.mxu0 0.0
    %855 = vmatmul.mubr.f32.gmra.mrb[0].mxu0 %v785
    %v856 = vpop.f32.mrb[0].mxu0
    %v857 = vadd.f32 %v782, %v856
    %v858 = vpop.f32.mrb[0].mxu0
    %859 = vmatprep.mubr.f32.mxu0 0.0
    %860 = vmatmul.mubr.f32.gmra.mrb[0].mxu0 %v788
    %v861 = vpop.f32.mrb[0].mxu0
    %v862 = vadd.f32 %v782, %v861
    %v863 = vpop.f32.mrb[0].mxu0
    %864 = vdwg.mxu0
    %v865 = vmax.f32 %v857, 0.0
    %v866 = vmax.f32 %v862, 0.0
    %v867 = vld [vmem:[%s6] sm:$0xff]
    %v868 = vld [vmem:[%s6 + $0x8] sm:$0xff]
    %v869 = vld [vmem:[%s6 + $0x10] sm:$0xff]
    %v870 = vld [vmem:[%s6 + $0x18] sm:$0xff]
    %v871 = vld [vmem:[%s6 + $0x20] sm:$0xff]
    %v872 = vld [vmem:[%s6 + $0x28] sm:$0xff]
    %v873 = vld [vmem:[%s6 + $0x30] sm:$0xff]
    %v874 = vld [vmem:[%s6 + $0x38] sm:$0xff]
    %v875 = vlaneseq
    %v876 = vshrl.u32 %v875, 7
    %v877 = vsub.s32 1, %v876
    %v878 = vrot.slane %v46, %v877
    %v880 = vsel %vm369, %v865, 0
    %v883 = vsel %vm369, %v866, 0
    %885 = vmatprep.subr.mxu0 0.0
    %886 = vmatpush1.msra.mxu0 %v867
    %887 = vmatprep.subr.mxu0 0.0
    %888 = vmatpush1.msra.mxu0 %v868
    %889 = vmatprep.subr.mxu0 0.0
    %890 = vmatpush1.msra.mxu0 %v869
    %891 = vmatprep.subr.mxu0 0.0
    %892 = vmatpush1.msra.mxu0 %v870
    %893 = vmatprep.subr.mxu0 0.0
    %894 = vmatpush1.msra.mxu0 %v871
    %895 = vmatprep.subr.mxu0 0.0
    %896 = vmatpush1.msra.mxu0 %v872
    %897 = vmatprep.subr.mxu0 0.0
    %898 = vmatpush1.msra.mxu0 %v873
    %899 = vmatprep.subr.mxu0 0.0
    %900 = vmatpush1.msra.mxu0 %v874
    %901 = vmatprep.subr.mxu0 0.0
    %902 = vmatpush1.msra.mxu0 0.0
    %903 = vmatprep.subr.mxu0 0.0
    %904 = vmatpush1.msra.mxu0 0.0
    %905 = vmatprep.subr.mxu0 0.0
    %906 = vmatpush1.msra.mxu0 0.0
    %907 = vmatprep.subr.mxu0 0.0
    %908 = vmatpush1.msra.mxu0 0.0
    %909 = vmatprep.subr.mxu0 0.0
    %910 = vmatpush1.msra.mxu0 0.0
    %911 = vmatprep.subr.mxu0 0.0
    %912 = vmatpush1.msra.mxu0 0.0
    %913 = vmatprep.subr.mxu0 0.0
    %914 = vmatpush1.msra.mxu0 0.0
    %915 = vmatprep.subr.mxu0 0.0
    %916 = vmatpush1.msra.mxu0 0.0
    %917 = vmatprep.subr.mxu0 0.0
    %918 = vmatpush1.msra.mxu0 0.0
    %919 = vmatprep.subr.mxu0 0.0
    %920 = vmatpush1.msra.mxu0 0.0
    %921 = vmatprep.subr.mxu0 0.0
    %922 = vmatpush1.msra.mxu0 0.0
    %923 = vmatprep.subr.mxu0 0.0
    %924 = vmatpush1.msra.mxu0 0.0
    %925 = vmatprep.subr.mxu0 0.0
    %926 = vmatpush1.msra.mxu0 0.0
    %927 = vmatprep.subr.mxu0 0.0
    %928 = vmatpush1.msra.mxu0 0.0
    %929 = vmatprep.subr.mxu0 0.0
    %930 = vmatpush1.msra.mxu0 0.0
    %931 = vmatprep.subr.mxu0 0.0
    %932 = vmatpush1.msra.mxu0 0.0
    %933 = vmatprep.subr.mxu0 0.0
    %934 = vmatpush1.msra.mxu0 0.0
    %935 = vmatprep.subr.mxu0 0.0
    %936 = vmatpush1.msra.mxu0 0.0
    %937 = vmatprep.subr.mxu0 0.0
    %938 = vmatpush1.msra.mxu0 0.0
    %939 = vmatprep.subr.mxu0 0.0
    %940 = vmatpush1.msra.mxu0 0.0
    %941 = vmatprep.subr.mxu0 0.0
    %942 = vmatpush1.msra.mxu0 0.0
    %943 = vmatprep.subr.mxu0 0.0
    %944 = vmatpush1.msra.mxu0 0.0
    %945 = vmatprep.subr.mxu0 0.0
    %946 = vmatpush1.msra.mxu0 0.0
    %947 = vmatprep.subr.mxu0 0.0
    %948 = vmatpush1.msra.mxu0 0.0
    %949 = vmatprep.mubr.f32.mxu0 0.0
    %950 = vmatmul.mubr.f32.gmra.mrb[0].mxu0 %v880
    %v951 = vpop.f32.mrb[0].mxu0
    %v952 = vadd.f32 %v878, %v951
    %v953 = vpop.f32.mrb[0].mxu0
    %954 = vmatprep.mubr.f32.mxu0 0.0
    %955 = vmatmul.mubr.f32.gmra.mrb[0].mxu0 %v883
    %v956 = vpop.f32.mrb[0].mxu0
    %v957 = vadd.f32 %v878, %v956
    %v958 = vpop.f32.mrb[0].mxu0
    %959 = vdwg.mxu0
    %v960 = vadd.f32 %v771, %v952
    %v961 = vadd.f32 %v772, %v957
    %v962 = vsel %vm58, %v960, 0.0
    %963 = vadd.xlane.f32.xlu0 %v962
    %v964 = vpop.xlane.xlu0 %963
    %v965 = vsel %vm58, %v961, 0.0
    %966 = vadd.xlane.f32.xlu0 %v965
    %v967 = vpop.xlane.xlu0 %966
    %v968 = vmul.f32 %v964, %v740
    %v969 = vmul.f32 %v967, %v740
    %v970 = vsub.f32 %v960, %v968
    %v971 = vsub.f32 %v961, %v969
    %v972 = vmul.f32 %v970, %v970
    %v973 = vmul.f32 %v971, %v971
    %v974 = vsel %vm58, %v972, 0.0
    %975 = vadd.xlane.f32.xlu0 %v974
    %v976 = vpop.xlane.xlu0 %975
    %v977 = vsel %vm58, %v973, 0.0
    %978 = vadd.xlane.f32.xlu0 %v977
    %v979 = vpop.xlane.xlu0 %978
    %v980 = vmul.f32 %v976, %v740
    %v981 = vmul.f32 %v979, %v740
    %v982 = vadd.f32 %v980, 1e-05
    %v983 = vadd.f32 %v981, 1e-05
    %v984 = vrsqrt.pop %v982
    %v985 = vrsqrt.pop %v983
    %v986 = vmul.f32 %v970, %v984
    %v987 = vmul.f32 %v971, %v985
    %v988 = vlaneseq
    %v989 = vshrl.u32 %v988, 7
    %v990 = vsub.s32 4, %v989
    %v991 = vrot.slane %v46, %v990
    %v992 = vmul.f32 %v986, %v991
    %v993 = vmul.f32 %v987, %v991
    %v994 = vlaneseq
    %v995 = vshrl.u32 %v994, 7
    %v996 = vsub.s32 5, %v995
    %v997 = vrot.slane %v46, %v996
    %v998 = vadd.f32 %v992, %v997
    %v999 = vadd.f32 %v993, %v997
    %1000 = vst.msk [vmem:[#allocation5] sm:$0xff] %vm58, %v998
    %1001 = vst.msk [vmem:[#allocation5 + $0x8] sm:$0xff] %vm58, %v999
    // Predicated region
    $region38: #{tpu_custom_call.1} parent=1 // pred_check
      _
    $region39: #{tpu_custom_call.1} parent=1 // pred_check_branch
      %1003 = sbr.rel (0) target = $region41
    $region40: #{tpu_custom_call.1} parent=1 // pred_region
      %s1005 = ssub.s32 256, 256
      %1006 = vsyncadd [#allocation4], %s1005
      %s1007 = sshll.u32 [#allocation5], 4
      %s1008 = int_to_ptr.vmem [resolvable:$true] %s1007
      %1013 = dma.vmem_to_hbm [thread:$0]  %s1008, 256, %s8, [#allocation4], 128, 128, 8
    $region41: #{tpu_custom_call.1} parent=1 // pred_fallthru
      _
    // Predicated region
    $region42: #{tpu_custom_call.1} parent=1 // pred_check
      _
    $region43: #{tpu_custom_call.1} parent=1 // pred_check_branch
      %1015 = sbr.rel (0) target = $region45
    $region44: #{tpu_custom_call.1} parent=1 // pred_region
      %1016 = dma.done [#allocation4], 256
    $region45: #{tpu_custom_call.1} parent=1 // pred_fallthru
      _
    %1017 = vsyncpa [#allocation3], 1
    %1018 = vsyncpa [#allocation4], 1

</llo_original>
